<compile_context>
chip_gen: v6e
topology: v6e:2x2x1
jax: 0.10.0
libtpu: 0.0.40
codegen_flags: <defaults>
</compile_context>

<pallas_src>
from functools import partial

import jax
import jax.numpy as jnp
from jax.experimental import pallas as pl
from jax.experimental.pallas import tpu as pltpu

_MIB = 1024 * 1024


# --------------------------------------------------------------------------- #
# Kernels
# --------------------------------------------------------------------------- #
def _partial_contrib(x_ref, w1_ref, b1_ref, w2_ref, th):
    """One hidden-tile contribution to the down projection (f32)."""
    x = x_ref[...]
    # Fused gate|up matmul: (tm, d_in_p) @ (d_in_p, 2*th) -> (tm, 2*th), f32 acc.
    h = jnp.dot(x, w1_ref[...], preferred_element_type=jnp.float32) + b1_ref[...]
    g = h[:, :th]          # gate half   (lane-aligned static slice, no copy)
    u = h[:, th:]          # up half
    # SiLU(g) * u  (sigmoid -> EUP, mul -> VPU), cast back to bf16 for the MXU.
    gated = (g * jax.nn.sigmoid(g) * u).astype(w2_ref.dtype)
    return jnp.dot(gated, w2_ref[...], preferred_element_type=jnp.float32)


def swiglu_kernel_scratch(x_ref, w1_ref, b1_ref, w2_ref, b2_ref, o_ref, acc_ref,
                          *, th):
    """Accumulate into a f32 VMEM scratch; used when the output dtype is narrow."""
    h_idx = pl.program_id(1)

    @pl.when(h_idx == 0)
    def _init():
        acc_ref[...] = jnp.zeros_like(acc_ref)

    acc_ref[...] += _partial_contrib(x_ref, w1_ref, b1_ref, w2_ref, th)

    @pl.when(h_idx == pl.num_programs(1) - 1)
    def _finalize():
        o_ref[...] = (acc_ref[...] + b2_ref[...]).astype(o_ref.dtype)


def swiglu_kernel_f32out(x_ref, w1_ref, b1_ref, w2_ref, b2_ref, o_ref, *, th):
    """f32 output: accumulate directly into o_ref (resident across the h axis),
    no scratch accumulator -> saves tm*d_out_p*4 bytes of VMEM (v7x headroom)."""
    h_idx = pl.program_id(1)

    @pl.when(h_idx == 0)
    def _init():
        o_ref[...] = jnp.broadcast_to(b2_ref[...], o_ref.shape)

    o_ref[...] += _partial_contrib(x_ref, w1_ref, b1_ref, w2_ref, th)


# --------------------------------------------------------------------------- #
# Helpers
# --------------------------------------------------------------------------- #
def _round_up(n: int, m: int) -> int:
    return ((n + m - 1) // m) * m


def _cdiv(a: int, b: int) -> int:
    return -(-a // b)


def _vmem_budget(requested):
    """Per-call VMEM limit: ~96 MiB on 128 MiB parts (v5e/v6e), ~56 MiB on v7x."""
    if requested is not None:
        return int(requested)
    try:
        cap = int(getattr(pltpu.get_tpu_info(), "vmem_capacity_bytes"))
    except Exception:
        cap = 64 * _MIB  # conservative fallback (v7x per-TC)
    return min(96 * _MIB, cap - cap // 8)


def init_params(key, dim, hddn_dim, ctxt_dim=0, dtype=jnp.float32):
    """Deterministic init matching nn.Linear shapes (W: (out, in), b: (out,))."""
    k1, k2, k3, k4 = jax.random.split(key, 4)
    d_in = dim + ctxt_dim
    s1 = 1.0 / jnp.sqrt(d_in)
    s2 = 1.0 / jnp.sqrt(hddn_dim)
    return {
        "w1": jax.random.uniform(k1, (2 * hddn_dim, d_in), dtype, -s1, s1),
        "b1": jax.random.uniform(k2, (2 * hddn_dim,), dtype, -s1, s1),
        "w2": jax.random.uniform(k3, (dim, hddn_dim), dtype, -s2, s2),
        "b2": jax.random.uniform(k4, (dim,), dtype, -s2, s2),
    }


def prepare_params(params, compute_dtype=jnp.bfloat16, th=512):
    """One-time prep: fuse w1 into a single (d_in_p, 2*hddn_p) [gate|up]-per-tile
    matrix, transpose to (in, out), pad feature dims to multiples of 128 and the
    hidden dim to a multiple of th (lane-dense, never collapses the tile), cast
    weights to bf16 (biases stay f32)."""
    w1, b1, w2, b2 = params["w1"], params["b1"], params["w2"], params["b2"]
    two_h, d_in = w1.shape
    hddn = two_h // 2
    d_out = w2.shape[0]

    d_in_p = _round_up(d_in, 128)
    d_out_p = _round_up(d_out, 128)
    th = max(128, min(_round_up(int(th), 128), _round_up(hddn, 128)))
    hddn_p = _round_up(hddn, th)
    n_h = hddn_p // th

    f32 = jnp.float32
    # gate / up halves, transposed to (in, out), zero-padded
    wg_t = jnp.zeros((d_in_p, hddn_p), f32).at[:d_in, :hddn].set(w1[:hddn].T.astype(f32))
    wu_t = jnp.zeros((d_in_p, hddn_p), f32).at[:d_in, :hddn].set(w1[hddn:].T.astype(f32))
    bg = jnp.zeros((hddn_p,), f32).at[:hddn].set(b1[:hddn].astype(f32))
    bu = jnp.zeros((hddn_p,), f32).at[:hddn].set(b1[hddn:].astype(f32))

    # Interleave at hidden-tile granularity: for tile j,
    # columns [j*2*th, j*2*th+th) = gate tile j, [j*2*th+th, (j+1)*2*th) = up tile j.
    w1_fused = jnp.concatenate(
        [wg_t.reshape(d_in_p, n_h, th), wu_t.reshape(d_in_p, n_h, th)], axis=-1
    ).reshape(d_in_p, 2 * hddn_p).astype(compute_dtype)
    b1_fused = jnp.concatenate(
        [bg.reshape(n_h, th), bu.reshape(n_h, th)], axis=-1
    ).reshape(1, 2 * hddn_p)  # stays f32

    w2_t = jnp.zeros((hddn_p, d_out_p), f32).at[:hddn, :d_out].set(
        w2.T.astype(f32)).astype(compute_dtype)
    b2_p = jnp.zeros((1, d_out_p), f32).at[0, :d_out].set(b2.astype(f32))

    return {
        "w1_fused": w1_fused, "b1_fused": b1_fused, "w2_t": w2_t, "b2": b2_p,
        "d_in": int(d_in), "d_out": int(d_out), "hddn": int(hddn),
        "d_in_p": int(d_in_p), "d_out_p": int(d_out_p), "hddn_p": int(hddn_p),
        "th": int(th), "compute_dtype": compute_dtype,
    }


# --------------------------------------------------------------------------- #
# Wrapper
# --------------------------------------------------------------------------- #
def swiglu_net(x, ctxt, prepped, *, tm=512, vmem_limit_bytes=None):
    """x: (..., dim); ctxt: (batch, ctxt_dim) or None. Returns (..., dim)."""
    compute_dtype = prepped["compute_dtype"]
    out_dtype = x.dtype

    # attach_context — cast to the compute dtype FIRST so the concat/pad pass
    # over x happens in bf16 (no extra f32 HBM round-trip before the kernel).
    if ctxt is not None:
        dim_diff = x.ndim - ctxt.ndim
        c = ctxt.astype(compute_dtype)
        if dim_diff > 0:
            c = c.reshape(c.shape[0], *([1] * dim_diff), *c.shape[1:])
            c = jnp.broadcast_to(c, (*x.shape[:-1], c.shape[-1]))
        xin = jnp.concatenate([x.astype(compute_dtype), c], axis=-1)
    else:
        xin = x.astype(compute_dtype)

    lead_shape = xin.shape[:-1]
    d_in = xin.shape[-1]
    assert d_in == prepped["d_in"], "input feature dim does not match params"

    w1_fused, b1_fused = prepped["w1_fused"], prepped["b1_fused"]
    w2_t, b2 = prepped["w2_t"], prepped["b2"]
    d_in_p, hddn_p = prepped["d_in_p"], prepped["hddn_p"]
    d_out_p, d_out = prepped["d_out_p"], prepped["d_out"]
    th = prepped["th"]

    use_direct = jnp.dtype(out_dtype) == jnp.dtype(jnp.float32)
    cd_sz = jnp.dtype(compute_dtype).itemsize
    od_sz = jnp.dtype(out_dtype).itemsize

    x2d = xin.reshape(-1, d_in)
    n_rows = x2d.shape[0]
    n_rows_eff = max(n_rows, 1)

    vmem_limit = _vmem_budget(vmem_limit_bytes)

    def _fits(tm_):
        # Double-buffered tiles + biases + (optional) f32 accumulator, with headroom.
        used = (2 * tm_ * d_in_p * cd_sz            # x
                + 2 * d_in_p * (2 * th) * cd_sz     # fused w1 slice
                + 2 * th * d_out_p * cd_sz          # w2 slice
                + 2 * (2 * th + d_out_p) * 4        # biases
                + 2 * tm_ * d_out_p * od_sz         # out
                + (0 if use_direct else tm_ * d_out_p * 4))
        return used <= vmem_limit * 7 // 8

    # Row tile: large (arithmetic intensity vs weight bytes ~ tm), clamped by
    # rows and by the VMEM budget; kept a multiple of 16 (bf16 sublane packing).
    tm = max(16, _round_up(int(tm), 16))
    tm = min(tm, _round_up(n_rows_eff, 16))
    while tm > 128 and not _fits(tm):
        tm = max(128, _round_up(tm // 2, 16))

    # Ensure >=2 row tiles when rows allow, so the "parallel" axis feeds both
    # TensorCores on v7x megacore; rebalance tm to minimize row padding.
    nt = _cdiv(n_rows_eff, tm)
    if n_rows_eff > 16:
        nt = max(nt, 2)
    tm = max(16, _round_up(_cdiv(n_rows_eff, nt), 16))
    n_rows_p = nt * tm

    x2d = jnp.pad(x2d, ((0, n_rows_p - n_rows), (0, d_in_p - d_in)))

    grid = (nt, hddn_p // th)

    # Advisory cost estimate (weight term scales with the number of row tiles).
    w_bytes = (w1_fused.size + w2_t.size) * cd_sz
    flops = 2 * n_rows_p * (d_in_p * 2 * hddn_p + hddn_p * d_out_p)
    bytes_accessed = int(n_rows_p * d_in_p * cd_sz
                         + grid[0] * w_bytes
                         + n_rows_p * d_out_p * od_sz)
    cost = pl.CostEstimate(flops=flops,
                           transcendentals=n_rows_p * hddn_p,
                           bytes_accessed=bytes_accessed)

    if use_direct:
        kernel = partial(swiglu_kernel_f32out, th=th)
        scratch_shapes = []
    else:
        kernel = partial(swiglu_kernel_scratch, th=th)
        scratch_shapes = [pltpu.VMEM((tm, d_out_p), jnp.float32)]

    # NOTE: if a profile still shows exposed weight DMA at large tm, add
    # pipeline_mode=pl.Buffered(3) on the w1/w2 BlockSpecs (check VMEM on v7x).
    out2d = pl.pallas_call(
        kernel,
        out_shape=jax.ShapeDtypeStruct((n_rows_p, d_out_p), out_dtype),
        grid_spec=pltpu.PrefetchScalarGridSpec(
            num_scalar_prefetch=0,
            grid=grid,
            in_specs=[
                pl.BlockSpec((tm, d_in_p), lambda i, h: (i, 0)),      # x rows (resident over h)
                pl.BlockSpec((d_in_p, 2 * th), lambda i, h: (0, h)),  # fused gate|up weight slice
                pl.BlockSpec((1, 2 * th), lambda i, h: (0, h)),       # fused gate|up bias slice
                pl.BlockSpec((th, d_out_p), lambda i, h: (h, 0)),     # down-proj slice
                pl.BlockSpec((1, d_out_p), lambda i, h: (0, 0)),      # output bias
            ],
            out_specs=pl.BlockSpec((tm, d_out_p), lambda i, h: (i, 0)),
            scratch_shapes=scratch_shapes,
        ),
        compiler_params=pltpu.CompilerParams(
            dimension_semantics=("parallel", "arbitrary"),
            vmem_limit_bytes=int(vmem_limit)),
        cost_estimate=cost,
    )(x2d, w1_fused, b1_fused, w2_t, b2)

    out = out2d[:n_rows, :d_out]
    return out.reshape(*lead_shape, d_out)


# --------------------------------------------------------------------------- #
# Pure-JAX reference of the PyTorch forward
# --------------------------------------------------------------------------- #
def swiglu_ref(x, ctxt, params, compute_dtype=jnp.float32):
    if ctxt is not None:
        dim_diff = x.ndim - ctxt.ndim
        c = ctxt.reshape(ctxt.shape[0], *([1] * dim_diff), *ctxt.shape[1:])
        c = jnp.broadcast_to(c, (*x.shape[:-1], ctxt.shape[-1]))
        x = jnp.concatenate([x, c], axis=-1)
    xc = x.astype(compute_dtype)
    h = jnp.dot(xc, params["w1"].T.astype(compute_dtype),
                preferred_element_type=jnp.float32) + params["b1"].astype(jnp.float32)
    x1, x2 = jnp.split(h, 2, axis=-1)
    g = (jax.nn.silu(x1) * x2).astype(compute_dtype)
    out = jnp.dot(g, params["w2"].T.astype(compute_dtype),
                  preferred_element_type=jnp.float32) + params["b2"].astype(jnp.float32)
    return out.astype(x.dtype)


if __name__ == "__main__":
    batch, seq, dim, hddn_dim, ctxt_dim = 2, 8, 32, 192, 8

    key = jax.random.PRNGKey(0)
    kx, kc, kp = jax.random.split(key, 3)
    x = jax.random.normal(kx, (batch, seq, dim), jnp.float32)
    ctxt = jax.random.normal(kc, (batch, ctxt_dim), jnp.float32)

    params = init_params(kp, dim, hddn_dim, ctxt_dim)
    # th=128 so the small demo exercises multiple hidden tiles / fused layout / accumulation.
    prepped = prepare_params(params, compute_dtype=jnp.bfloat16, th=128)

    # f32-output path (accumulates directly into o_ref, no scratch).
    out = jax.block_until_ready(swiglu_net(x, ctxt, prepped))
    assert out.shape == (batch, seq, dim) and out.dtype == x.dtype

    # Reference that quantizes matmul operands to bf16 the same way (tight check).
    ref_bf16 = swiglu_ref(x, ctxt, params, compute_dtype=jnp.bfloat16)
    # Full-f32 reference (loose check — bf16 data path introduces small error).
    ref_f32 = swiglu_ref(x, ctxt, params, compute_dtype=jnp.float32)
    assert jnp.allclose(out, ref_bf16, atol=1e-2, rtol=1e-2)
    assert jnp.allclose(out, ref_f32, atol=5e-2, rtol=5e-2)

    # bf16-output path (uses the f32 VMEM scratch accumulator variant).
    out_bf16 = jax.block_until_ready(
        swiglu_net(x.astype(jnp.bfloat16), ctxt.astype(jnp.bfloat16), prepped))
    assert out_bf16.dtype == jnp.bfloat16
    assert jnp.allclose(out_bf16.astype(jnp.float32), out, atol=2e-2, rtol=2e-2)

    print("KERNEL_OK")
</pallas_src>

<mosaic_0001>
module attributes {stable_mosaic.version = 11 : i64} {
  func.func @swiglu_kernel_f32out(%arg0: i32, %arg1: i32, %arg2: memref<16x128xbf16, #tpu.memory_space<vmem>>, %arg3: memref<128x256xbf16, #tpu.memory_space<vmem>>, %arg4: memref<1x256xf32, #tpu.memory_space<vmem>>, %arg5: memref<128x128xbf16, #tpu.memory_space<vmem>>, %arg6: memref<1x128xf32, #tpu.memory_space<vmem>>, %arg7: memref<16x128xf32, #tpu.memory_space<vmem>>) attributes {dimension_semantics = [#tpu.dimension_semantics<parallel>, #tpu.dimension_semantics<arbitrary>], iteration_bounds = array<i64: 1, 2>, scalar_prefetch = 0 : i64, scratch_operands = 0 : i64, tpu.core_type = #tpu.core_type<tc>, window_params = [{transform_indices = @transform_0, window_bounds = array<i64: 16, 128>}, {transform_indices = @transform_1, window_bounds = array<i64: 128, 256>}, {transform_indices = @transform_2, window_bounds = array<i64: 1, 256>}, {transform_indices = @transform_3, window_bounds = array<i64: 128, 128>}, {pipeline_mode = #tpu.pipeline_mode<synchronous>, transform_indices = @transform_4, window_bounds = array<i64: 1, 128>}, {transform_indices = @transform_5, window_bounds = array<i64: 16, 128>}]} {
    %c0_i32 = arith.constant 0 : i32
    %0 = arith.cmpi eq, %arg1, %c0_i32 : i32
    %1 = arith.extui %0 : i1 to i32
    %c0_i32_0 = arith.constant 0 : i32
    %2 = arith.cmpi ne, %1, %c0_i32_0 : i32
    scf.if %2 {
      %c0_14 = arith.constant 0 : index
      %c0_15 = arith.constant 0 : index
      %24 = vector.load %arg6[%c0_14, %c0_15] : memref<1x128xf32, #tpu.memory_space<vmem>>, vector<1x128xf32>
      %25 = vector.shape_cast %24 : vector<1x128xf32> to vector<1x128xf32>
      %26 = vector.broadcast %25 : vector<1x128xf32> to vector<16x128xf32>
      %c0_16 = arith.constant 0 : index
      %c0_17 = arith.constant 0 : index
      %27 = vector.load %arg7[%c0_16, %c0_17] : memref<16x128xf32, #tpu.memory_space<vmem>>, vector<16x128xf32>
      tpu.vector_store %arg7[%c0_16, %c0_17], %26 {strides = array<i32>} : memref<16x128xf32, #tpu.memory_space<vmem>>, vector<16x128xf32>,
    } else {
    }
    %c0 = arith.constant 0 : index
    %c0_1 = arith.constant 0 : index
    %3 = vector.load %arg7[%c0, %c0_1] : memref<16x128xf32, #tpu.memory_space<vmem>>, vector<16x128xf32>
    %c0_2 = arith.constant 0 : index
    %c0_3 = arith.constant 0 : index
    %4 = vector.load %arg2[%c0_2, %c0_3] : memref<16x128xbf16, #tpu.memory_space<vmem>>, vector<16x128xbf16>
    %c0_4 = arith.constant 0 : index
    %c0_5 = arith.constant 0 : index
    %5 = vector.load %arg3[%c0_4, %c0_5] : memref<128x256xbf16, #tpu.memory_space<vmem>>, vector<128x256xbf16>
    %cst = arith.constant dense<0.000000e+00> : vector<16x256xf32>
    %6 = tpu.matmul %4, %5, %cst {dimension_numbers = #tpu.dot_dimension_numbers<[1], [0], [0], [1], [0, 0, 1, 1], [], []>} : vector<16x128xbf16>, vector<128x256xbf16>, vector<16x256xf32> -> vector<16x256xf32>
    %c0_6 = arith.constant 0 : index
    %c0_7 = arith.constant 0 : index
    %7 = vector.load %arg4[%c0_6, %c0_7] : memref<1x256xf32, #tpu.memory_space<vmem>>, vector<1x256xf32>
    %8 = vector.broadcast %7 : vector<1x256xf32> to vector<16x256xf32>
    %9 = arith.addf %6, %8 : vector<16x256xf32>
    %10 = vector.extract_strided_slice %9 {offsets = [0, 0], sizes = [16, 128], strides = [1, 1]} : vector<16x256xf32> to vector<16x128xf32>
    %11 = vector.extract_strided_slice %9 {offsets = [0, 128], sizes = [16, 128], strides = [1, 1]} : vector<16x256xf32> to vector<16x128xf32>
    %12 = arith.negf %10 : vector<16x128xf32>
    %13 = math.exp %12 : vector<16x128xf32>
    %cst_8 = arith.constant 1.000000e+00 : f32
    %14 = vector.broadcast %cst_8 : f32 to vector<16x128xf32>
    %15 = arith.addf %14, %13 : vector<16x128xf32>
    %16 = arith.divf %14, %15 : vector<16x128xf32>
    %17 = arith.mulf %10, %16 : vector<16x128xf32>
    %18 = arith.mulf %17, %11 : vector<16x128xf32>
    %19 = arith.truncf %18 : vector<16x128xf32> to vector<16x128xbf16>
    %c0_9 = arith.constant 0 : index
    %c0_10 = arith.constant 0 : index
    %20 = vector.load %arg5[%c0_9, %c0_10] : memref<128x128xbf16, #tpu.memory_space<vmem>>, vector<128x128xbf16>
    %cst_11 = arith.constant dense<0.000000e+00> : vector<16x128xf32>
    %21 = tpu.matmul %19, %20, %cst_11 {dimension_numbers = #tpu.dot_dimension_numbers<[1], [0], [0], [1], [0, 0, 1, 1], [], []>} : vector<16x128xbf16>, vector<128x128xbf16>, vector<16x128xf32> -> vector<16x128xf32>
    %22 = arith.addf %3, %21 : vector<16x128xf32>
    %c0_12 = arith.constant 0 : index
    %c0_13 = arith.constant 0 : index
    %23 = vector.load %arg7[%c0_12, %c0_13] : memref<16x128xf32, #tpu.memory_space<vmem>>, vector<16x128xf32>
    tpu.vector_store %arg7[%c0_12, %c0_13], %22 {strides = array<i32>} : memref<16x128xf32, #tpu.memory_space<vmem>>, vector<16x128xf32>,
    return
  }
  func.func @transform_0(%arg0: i32, %arg1: i32) -> (i32, i32) {
    %c0_i32 = arith.constant 0 : i32
    %c0_i32_0 = arith.constant 0 : i32
    return %arg0, %c0_i32 : i32, i32
  }
  func.func @transform_1(%arg0: i32, %arg1: i32) -> (i32, i32) {
    %c0_i32 = arith.constant 0 : i32
    %c0_i32_0 = arith.constant 0 : i32
    return %c0_i32, %arg1 : i32, i32
  }
  func.func @transform_2(%arg0: i32, %arg1: i32) -> (i32, i32) {
    %c0_i32 = arith.constant 0 : i32
    %c0_i32_0 = arith.constant 0 : i32
    return %c0_i32, %arg1 : i32, i32
  }
  func.func @transform_3(%arg0: i32, %arg1: i32) -> (i32, i32) {
    %c0_i32 = arith.constant 0 : i32
    %c0_i32_0 = arith.constant 0 : i32
    return %arg1, %c0_i32 : i32, i32
  }
  func.func @transform_4(%arg0: i32, %arg1: i32) -> (i32, i32) {
    %c0_i32 = arith.constant 0 : i32
    %c0_i32_0 = arith.constant 0 : i32
    %c0_i32_1 = arith.constant 0 : i32
    return %c0_i32, %c0_i32_0 : i32, i32
  }
  func.func @transform_5(%arg0: i32, %arg1: i32) -> (i32, i32) {
    %c0_i32 = arith.constant 0 : i32
    %c0_i32_0 = arith.constant 0 : i32
    return %arg0, %c0_i32 : i32, i32
  }
}

</mosaic_0001>

<llo_original>
// kernel: tpu_custom_call.1
$region0: #{tpu_custom_call.1}
  #allocation0 [shape = 'u32[]', space=smem, size = 0x4, offset = 0x4, fixed_abs, tag = 'smem constant byte address 0x4 - core index']
  #allocation1 [shape = 'u32[144,128]{1,0:T(1,128)}', space=vmem, size = 0x12000, scoped, tag = 'internal scratch']
  %s0 = inlined_call_operand.hbm [shape: bf16[16,128], index: 0, kind: input, shape index: {}]
  %s1 = inlined_call_operand.hbm [shape: bf16[128,512], index: 1, kind: input, shape index: {}]
  %s2 = inlined_call_operand.hbm [shape: f32[1,512], index: 2, kind: input, shape index: {}]
  %s3 = inlined_call_operand.hbm [shape: bf16[256,128], index: 3, kind: input, shape index: {}]
  %s4 = inlined_call_operand.vmem [shape: f32[1,128], index: 4, kind: input, shape index: {}]
  %s5 = inlined_call_operand.hbm [shape: f32[16,128], index: 5, kind: output, shape index: {}]
  %s6 = sld [smem:[#allocation0]]
  $region73: #{tpu_custom_call.1} parent=0
    _
  %s8 = ssub.s32 1, %s6
  %s9 = scalar_select 0, %s8, %s6
  $region1: #{tpu_custom_call.1} parent=0
    #allocation2 [shape = 'u8[4096]{0}', space=vmem, size = 0x1000, scoped, tag = 'input window, operand 0, single buffered']
    #allocation3 [shape = 's32[2]{0}', space=sflag, size = 0x8, scoped, tag = 'scoped memory for tpu_custom_call.1']
    #allocation4 [shape = 's32[2]{0}', space=sflag, size = 0x8, scoped, tag = 'scoped memory for tpu_custom_call.1']
    #allocation5 [shape = 'u8[131072]{0}', space=vmem, size = 0x20000, scoped, tag = 'input window, operand 1']
    #allocation6 [shape = 's32[2]{0}', space=sflag, size = 0x8, scoped, tag = 'scoped memory for tpu_custom_call.1']
    #allocation7 [shape = 'u8[2048]{0}', space=vmem, size = 0x800, scoped, tag = 'input window, operand 2']
    #allocation8 [shape = 'u8[65536]{0}', space=vmem, size = 0x10000, scoped, tag = 'input window, operand 3']
    #allocation9 [shape = 's32[2]{0}', space=sflag, size = 0x8, scoped, tag = 'scoped memory for tpu_custom_call.1']
    #allocation10 [shape = 'u8[8192]{0}', space=vmem, size = 0x2000, scoped, tag = 'output window, operand 0, single buffered']
    %10 = vsyncpa [#allocation3], 0
    %11 = vsyncpa [#allocation6], 0
    %s12 = scalar_lea.sflag [#allocation6], 1
    %13 = vsyncpa %s12, 0
    %14 = vsyncpa [#allocation9], 0
    %s15 = scalar_lea.sflag [#allocation9], 1
    %16 = vsyncpa %s15, 0
    %17 = vsyncpa [#allocation4], 0
    loop: start=0, step=1, limit=4
    $region2: #{tpu_custom_call.1} parent=1 // loop_pre_header
      _
    $region3: #{tpu_custom_call.1} parent=1 // loop_header
      %s19 = sphi 0, %s23
      %p20 = scmp.ge.s32.totalorder %s19, 4
      %s26 = sphi 0, %s38
      %s27 = sphi 0, %s34
      %s28 = sphi 0, %s26
      %s29 = sphi 0, %s27
      %s30 = sphi 0, %s28
      %s31 = sphi 0, %s29
      %s41 = sphi 0, %s43
      %s44 = sphi 0, %s41
      %s45 = sphi 0, %s44
      %s61 = sphi 0, %s45
      %s67 = sphi 0, %s69
      %s70 = sphi 0, %s67
      %s71 = sphi 0, %s70
      %s87 = sphi 0, %s71
      %s93 = sphi 0, %s95
      %s96 = sphi 0, %s93
      %s97 = sphi 0, %s96
      %s113 = sphi 0, %s97
      %s119 = sphi 0, %s121
      %s122 = sphi 0, %s119
      %s123 = sphi 0, %s122
      %s139 = sphi 0, %s123
      %s143 = sphi 0, %s143
      %s145 = sphi 0, %s143
      %s146 = sphi 0, %s145
      %s160 = sphi 0, %s146
      %s166 = sphi 0, %s168
      %s169 = sphi 0, %s166
      %s170 = sphi 0, %s169
      %s186 = sphi 0, %s170
    $region4: #{tpu_custom_call.1} parent=1 // loop_header_branch
      %22 = sbr.rel (%p20) target = $region8
    $region5: #{tpu_custom_call.1} parent=1 // loop_body
      %s24 = ssub.s32 %s19, 1
      %s25 = ssub.s32 %s19, 2
      %s32 = sadd.s32 1, %s27
      %p33 = scmp.ge.s32.totalorder %s32, 2
      %s34 = scalar_select %p33, 0, %s32
      %s35 = sadd.s32 1, %s26
      %s36 = scalar_select %p33, %s35, %s26
      %p37 = scmp.ge.s32.totalorder %s36, 1
      %s38 = scalar_select %p37, 0, %s36
      %s39 = ssub.s32 %s26, %s38
      %p40 = scmp.eq.s32.totalorder %s39, 0
      %s42 = sadd.s32 %s41, 1
      %s43 = scalar_select %p40, %s41, %s42
      %p46 = pneg %p40
      %p47 = scmp.eq.s32.totalorder %s19, 1
      %p48 = por %p46, %p47
      %p49 = scmp.ne.s32.totalorder %s41, %s44
      %p50 = scmp.eq.s32.totalorder %s19, 0
      %p51 = por %p49, %p50
      %p52 = scmp.ne.s32.totalorder %s41, %s44
      %p53 = scmp.eq.s32.totalorder %s24, 1
      %p54 = por %p52, %p53
      %p55 = scmp.ne.s32.totalorder %s44, %s45
      %p56 = scmp.eq.s32.totalorder %s24, 0
      %p57 = por %p55, %p56
      %p58 = scmp.ne.s32.totalorder %s44, %s45
      %p59 = scmp.eq.s32.totalorder %s25, 1
      %p60 = por %p58, %p59
      %p62 = scmp.ne.s32.totalorder %s45, %s61
      %p63 = scmp.eq.s32.totalorder %s25, 0
      %p64 = por %p62, %p63
      %s65 = ssub.s32 %s27, %s34
      %p66 = scmp.eq.s32.totalorder %s65, 0
      %s68 = sadd.s32 %s67, 1
      %s69 = scalar_select %p66, %s67, %s68
      %p72 = pneg %p66
      %p73 = scmp.eq.s32.totalorder %s19, 1
      %p74 = por %p72, %p73
      %p75 = scmp.ne.s32.totalorder %s67, %s70
      %p76 = scmp.eq.s32.totalorder %s19, 0
      %p77 = por %p75, %p76
      %p78 = scmp.ne.s32.totalorder %s67, %s70
      %p79 = scmp.eq.s32.totalorder %s24, 1
      %p80 = por %p78, %p79
      %p81 = scmp.ne.s32.totalorder %s70, %s71
      %p82 = scmp.eq.s32.totalorder %s24, 0
      %p83 = por %p81, %p82
      %p84 = scmp.ne.s32.totalorder %s70, %s71
      %p85 = scmp.eq.s32.totalorder %s25, 1
      %p86 = por %p84, %p85
      %p88 = scmp.ne.s32.totalorder %s71, %s87
      %p89 = scmp.eq.s32.totalorder %s25, 0
      %p90 = por %p88, %p89
      %s91 = ssub.s32 %s27, %s34
      %p92 = scmp.eq.s32.totalorder %s91, 0
      %s94 = sadd.s32 %s93, 1
      %s95 = scalar_select %p92, %s93, %s94
      %p98 = pneg %p92
      %p99 = scmp.eq.s32.totalorder %s19, 1
      %p100 = por %p98, %p99
      %p101 = scmp.ne.s32.totalorder %s93, %s96
      %p102 = scmp.eq.s32.totalorder %s19, 0
      %p103 = por %p101, %p102
      %p104 = scmp.ne.s32.totalorder %s93, %s96
      %p105 = scmp.eq.s32.totalorder %s24, 1
      %p106 = por %p104, %p105
      %p107 = scmp.ne.s32.totalorder %s96, %s97
      %p108 = scmp.eq.s32.totalorder %s24, 0
      %p109 = por %p107, %p108
      %p110 = scmp.ne.s32.totalorder %s96, %s97
      %p111 = scmp.eq.s32.totalorder %s25, 1
      %p112 = por %p110, %p111
      %p114 = scmp.ne.s32.totalorder %s97, %s113
      %p115 = scmp.eq.s32.totalorder %s25, 0
      %p116 = por %p114, %p115
      %s117 = ssub.s32 %s27, %s34
      %p118 = scmp.eq.s32.totalorder %s117, 0
      %s120 = sadd.s32 %s119, 1
      %s121 = scalar_select %p118, %s119, %s120
      %p124 = pneg %p118
      %p125 = scmp.eq.s32.totalorder %s19, 1
      %p126 = por %p124, %p125
      %p127 = scmp.ne.s32.totalorder %s119, %s122
      %p128 = scmp.eq.s32.totalorder %s19, 0
      %p129 = por %p127, %p128
      %p130 = scmp.ne.s32.totalorder %s119, %s122
      %p131 = scmp.eq.s32.totalorder %s24, 1
      %p132 = por %p130, %p131
      %p133 = scmp.ne.s32.totalorder %s122, %s123
      %p134 = scmp.eq.s32.totalorder %s24, 0
      %p135 = por %p133, %p134
      %p136 = scmp.ne.s32.totalorder %s122, %s123
      %p137 = scmp.eq.s32.totalorder %s25, 1
      %p138 = por %p136, %p137
      %p140 = scmp.ne.s32.totalorder %s123, %s139
      %p141 = scmp.eq.s32.totalorder %s25, 0
      %p142 = por %p140, %p141
      %s144 = sadd.s32 %s143, 1
      %p147 = scmp.eq.s32.totalorder %s19, 1
      %p148 = scmp.ne.s32.totalorder %s143, %s145
      %p149 = scmp.eq.s32.totalorder %s19, 0
      %p150 = por %p148, %p149
      %p151 = scmp.ne.s32.totalorder %s143, %s145
      %p152 = scmp.eq.s32.totalorder %s24, 1
      %p153 = por %p151, %p152
      %p154 = scmp.ne.s32.totalorder %s145, %s146
      %p155 = scmp.eq.s32.totalorder %s24, 0
      %p156 = por %p154, %p155
      %p157 = scmp.ne.s32.totalorder %s145, %s146
      %p158 = scmp.eq.s32.totalorder %s25, 1
      %p159 = por %p157, %p158
      %p161 = scmp.ne.s32.totalorder %s146, %s160
      %p162 = scmp.eq.s32.totalorder %s25, 0
      %p163 = por %p161, %p162
      %s164 = ssub.s32 %s26, %s38
      %p165 = scmp.eq.s32.totalorder %s164, 0
      %s167 = sadd.s32 %s166, 1
      %s168 = scalar_select %p165, %s166, %s167
      %p171 = pneg %p165
      %p172 = scmp.eq.s32.totalorder %s19, 1
      %p173 = por %p171, %p172
      %p174 = scmp.ne.s32.totalorder %s166, %s169
      %p175 = scmp.eq.s32.totalorder %s19, 0
      %p176 = por %p174, %p175
      %p177 = scmp.ne.s32.totalorder %s166, %s169
      %p178 = scmp.eq.s32.totalorder %s24, 1
      %p179 = por %p177, %p178
      %p180 = scmp.ne.s32.totalorder %s169, %s170
      %p181 = scmp.eq.s32.totalorder %s24, 0
      %p182 = por %p180, %p181
      %p183 = scmp.ne.s32.totalorder %s169, %s170
      %p184 = scmp.eq.s32.totalorder %s25, 1
      %p185 = por %p183, %p184
      %p187 = scmp.ne.s32.totalorder %s170, %s186
      %p188 = scmp.eq.s32.totalorder %s25, 0
      %p189 = por %p187, %p188
      %p190 = scmp.le.s32.totalorder 1, %s19
      %p191 = scmp.lt.s32.totalorder %s19, 3
      %p192 = pnand %p190, %p191
      %p193 = pneg %p192
      // Predicated region
      $region9: #{tpu_custom_call.1} parent=5 // pred_check
        _
      $region10: #{tpu_custom_call.1} parent=5 // pred_check_branch
        %195 = sbr.rel (%p192) target = $region12
      $region11: #{tpu_custom_call.1} parent=5 // pred_region
        %s196 = ssub.s32 %s19, 1
        // Predicated region
        $region13: #{tpu_custom_call.1} parent=11 // pred_check
          %p197 = pneg %p57
        $region14: #{tpu_custom_call.1} parent=11 // pred_check_branch
          %199 = sbr.rel (%p197) target = $region16
        $region15: #{tpu_custom_call.1} parent=11 // pred_region
          %s200 = smul.u32 2, %s28
          %s202 = ssub.s32 128, 128
          %203 = vsyncadd [#allocation3], %s202
          %s204 = smul.addr %s200, 64
          %s205 = scalar_lea.hbm %s0, %s204
          %s206 = sshll.u32 [#allocation2], 4
          %s207 = int_to_ptr.vmem [resolvable:$true] %s206
          %212 = dma.hbm_to_vmem [thread:$0]  %s205, 128, %s207, [#allocation3], 64, 64, 4
        $region16: #{tpu_custom_call.1} parent=11 // pred_fallthru
          _
        // Predicated region
        $region17: #{tpu_custom_call.1} parent=11 // pred_check
          %p213 = pneg %p156
        $region18: #{tpu_custom_call.1} parent=11 // pred_check_branch
          %215 = sbr.rel (%p213) target = $region20
        $region19: #{tpu_custom_call.1} parent=11 // pred_region
          _
        $region20: #{tpu_custom_call.1} parent=11 // pred_fallthru
          _
      $region12: #{tpu_custom_call.1} parent=5 // pred_fallthru
        _
      %p216 = scmp.lt.s32.totalorder %s19, 2
      // Predicated region
      $region21: #{tpu_custom_call.1} parent=5 // pred_check
        %p217 = pneg %p216
      $region22: #{tpu_custom_call.1} parent=5 // pred_check_branch
        %219 = sbr.rel (%p217) target = $region24
      $region23: #{tpu_custom_call.1} parent=5 // pred_region
        // Predicated region
        $region25: #{tpu_custom_call.1} parent=23 // pred_check
          %p220 = pneg %p77
        $region26: #{tpu_custom_call.1} parent=23 // pred_check_branch
          %222 = sbr.rel (%p220) target = $region28
        $region27: #{tpu_custom_call.1} parent=23 // pred_region
          %s223 = sand.u32 %s19, 1
          %s224 = scalar_lea.sflag [#allocation6], %s223
          %s225 = sand.u32 %s67, 1
          %s226 = smul.addr %s225, 128
          %s227 = scalar_lea.vmem [#allocation5], %s226
          %s228 = smul.u32 2, %s27
          %s230 = ssub.s32 2048, 2048
          %231 = vsyncadd %s224, %s230
          %s232 = smul.addr %s228, 64
          %s233 = scalar_lea.hbm %s1, %s232
          %s234 = sshll.u32 %s227, 4
          %s235 = int_to_ptr.vmem [resolvable:$true] %s234
          %240 = dma.hbm_to_vmem [thread:$0]  %s233, 2048, %s235, %s224, 256, 128, 8
        $region28: #{tpu_custom_call.1} parent=23 // pred_fallthru
          _
        // Predicated region
        $region29: #{tpu_custom_call.1} parent=23 // pred_check
          %p241 = pneg %p103
        $region30: #{tpu_custom_call.1} parent=23 // pred_check_branch
          %243 = sbr.rel (%p241) target = $region32
        $region31: #{tpu_custom_call.1} parent=23 // pred_region
          %s244 = sand.u32 %s19, 1
          %s245 = scalar_lea.sflag [#allocation6], %s244
          %s246 = sand.u32 %s93, 1
          %s247 = smul.addr %s246, 2
          %s248 = scalar_lea.vmem [#allocation7], %s247
          %s249 = smul.u32 2, %s27
          %s251 = ssub.s32 32, 32
          %252 = vsyncadd %s245, %s251
          %s253 = smul.addr %s249, 16
          %s254 = scalar_lea.hbm %s2, %s253
          %s256 = sshll.u32 %s248, 4
          %s257 = int_to_ptr.vmem [resolvable:$true] %s256
          %259 = dma.hbm_to_vmem [thread:$0]  %s254, 32, %s257, %s245
        $region32: #{tpu_custom_call.1} parent=23 // pred_fallthru
          _
        // Predicated region
        $region33: #{tpu_custom_call.1} parent=23 // pred_check
          %p260 = pneg %p129
        $region34: #{tpu_custom_call.1} parent=23 // pred_check_branch
          %262 = sbr.rel (%p260) target = $region36
        $region35: #{tpu_custom_call.1} parent=23 // pred_region
          %s263 = sand.u32 %s119, 1
          %s264 = scalar_lea.sflag [#allocation9], %s263
          %s265 = sand.u32 %s119, 1
          %s266 = smul.addr %s265, 64
          %s267 = scalar_lea.vmem [#allocation8], %s266
          %s268 = smul.u32 16, %s27
          %s270 = ssub.s32 1024, 1024
          %271 = vsyncadd %s264, %s270
          %s272 = smul.addr %s268, 64
          %s273 = scalar_lea.hbm %s3, %s272
          %s274 = sshll.u32 %s267, 4
          %s275 = int_to_ptr.vmem [resolvable:$true] %s274
          %280 = dma.hbm_to_vmem [thread:$0]  %s273, 1024, %s275, %s264, 64, 64, 4
        $region36: #{tpu_custom_call.1} parent=23 // pred_fallthru
          _
      $region24: #{tpu_custom_call.1} parent=5 // pred_fallthru
        _
      %p281 = scmp.le.s32.totalorder 1, %s19
      %p282 = scmp.lt.s32.totalorder %s19, 3
      %p283 = pnand %p281, %p282
      %p284 = pneg %p283
      // Predicated region
      $region37: #{tpu_custom_call.1} parent=5 // pred_check
        _
      $region38: #{tpu_custom_call.1} parent=5 // pred_check_branch
        %286 = sbr.rel (%p283) target = $region40
      $region39: #{tpu_custom_call.1} parent=5 // pred_region
        %s287 = ssub.s32 %s19, 1
        // Predicated region
        $region41: #{tpu_custom_call.1} parent=39 // pred_check
          %p288 = pneg %p57
        $region42: #{tpu_custom_call.1} parent=39 // pred_check_branch
          %290 = sbr.rel (%p288) target = $region44
        $region43: #{tpu_custom_call.1} parent=39 // pred_region
          %291 = dma.done [#allocation3], 128
        $region44: #{tpu_custom_call.1} parent=39 // pred_fallthru
          _
        %s292 = sand.u32 %s24, 1
        %s293 = scalar_lea.sflag [#allocation6], %s292
        %s294 = sand.u32 %s70, 1
        %s295 = smul.addr %s294, 128
        %s296 = scalar_lea.vmem [#allocation5], %s295
        // Predicated region
        $region45: #{tpu_custom_call.1} parent=39 // pred_check
          %p297 = pneg %p83
        $region46: #{tpu_custom_call.1} parent=39 // pred_check_branch
          %299 = sbr.rel (%p297) target = $region48
        $region47: #{tpu_custom_call.1} parent=39 // pred_region
          %300 = dma.done %s293, 2048
        $region48: #{tpu_custom_call.1} parent=39 // pred_fallthru
          _
        %s301 = sand.u32 %s24, 1
        %s302 = scalar_lea.sflag [#allocation6], %s301
        %s303 = sand.u32 %s96, 1
        %s304 = smul.addr %s303, 2
        %s305 = scalar_lea.vmem [#allocation7], %s304
        // Predicated region
        $region49: #{tpu_custom_call.1} parent=39 // pred_check
          %p306 = pneg %p109
        $region50: #{tpu_custom_call.1} parent=39 // pred_check_branch
          %308 = sbr.rel (%p306) target = $region52
        $region51: #{tpu_custom_call.1} parent=39 // pred_region
          %309 = dma.done %s302, 32
        $region52: #{tpu_custom_call.1} parent=39 // pred_fallthru
          _
        %s310 = sand.u32 %s122, 1
        %s311 = scalar_lea.sflag [#allocation9], %s310
        %s312 = sand.u32 %s122, 1
        %s313 = smul.addr %s312, 64
        %s314 = scalar_lea.vmem [#allocation8], %s313
        // Predicated region
        $region53: #{tpu_custom_call.1} parent=39 // pred_check
          %p315 = pneg %p135
        $region54: #{tpu_custom_call.1} parent=39 // pred_check_branch
          %317 = sbr.rel (%p315) target = $region56
        $region55: #{tpu_custom_call.1} parent=39 // pred_region
          %318 = dma.done %s311, 1024
        $region56: #{tpu_custom_call.1} parent=39 // pred_fallthru
          _
        %p319 = pneg %p57
        %p320 = pneg %p54
        %s321 = sand.u32 %s24, 1
        %s322 = scalar_lea.sflag [#allocation6], %s321
        %s323 = sand.u32 %s70, 1
        %s324 = smul.addr %s323, 128
        %s325 = scalar_lea.vmem [#allocation5], %s324
        %p326 = pneg %p83
        %p327 = pneg %p80
        %s328 = sand.u32 %s24, 1
        %s329 = scalar_lea.sflag [#allocation6], %s328
        %s330 = sand.u32 %s96, 1
        %s331 = smul.addr %s330, 2
        %s332 = scalar_lea.vmem [#allocation7], %s331
        %p333 = pneg %p109
        %p334 = pneg %p106
        %s335 = sand.u32 %s122, 1
        %s336 = scalar_lea.sflag [#allocation9], %s335
        %s337 = sand.u32 %s122, 1
        %s338 = smul.addr %s337, 64
        %s339 = scalar_lea.vmem [#allocation8], %s338
        %p340 = pneg %p135
        %p341 = pneg %p132
        %p342 = pneg %p156
        %p343 = pneg %p153
        %p344 = pneg %p182
        %p345 = pneg %p179
        %s346 = smul.u32 2, %s28
        %s347 = smul.u32 2, %s29
        %s348 = smul.u32 2, %s29
        %s349 = smul.u32 16, %s29
        %s350 = smul.u32 2, %s28
        %p352 = scmp.eq.s32.totalorder %s29, 0
        // Predicated region
        $region57: #{tpu_custom_call.1} parent=39 // pred_check
          %p353 = pneg %p352
        $region58: #{tpu_custom_call.1} parent=39 // pred_check_branch
          %355 = sbr.rel (%p353) target = $region60
        $region59: #{tpu_custom_call.1} parent=39 // pred_region
          %v356 = vld [vmem:[%s4] sm:$0x1]
          %v358 = vlaneseq
          %v359 = vshrl.u32 %v358, 7
          %v360 = vsub.s32 0, %v359
          %v361 = vrot.slane %v356, %v360
          %363 = vst [vmem:[#allocation10] sm:$0xff] %v361
          %364 = vst [vmem:[#allocation10 + $0x8] sm:$0xff] %v361
        $region60: #{tpu_custom_call.1} parent=39 // pred_fallthru
          _
        %v365 = vld [vmem:[#allocation10] sm:$0xff]
        %v366 = vld [vmem:[#allocation10 + $0x8] sm:$0xff]
        %v367 = vld [vmem:[#allocation2] sm:$0xf]
        %v368 = vld [vmem:[#allocation2 + $0x4] sm:$0xf]
        %v369 = vld [vmem:[%s296] sm:$0xff]
        %v370 = vld [vmem:[%s296 + $0x8] sm:$0xff]
        %v371 = vld [vmem:[%s296 + $0x10] sm:$0xff]
        %v372 = vld [vmem:[%s296 + $0x18] sm:$0xff]
        %v373 = vld [vmem:[%s296 + $0x20] sm:$0xff]
        %v374 = vld [vmem:[%s296 + $0x28] sm:$0xff]
        %v375 = vld [vmem:[%s296 + $0x30] sm:$0xff]
        %v376 = vld [vmem:[%s296 + $0x38] sm:$0xff]
        %v377 = vld [vmem:[%s296 + $0x40] sm:$0xff]
        %v378 = vld [vmem:[%s296 + $0x48] sm:$0xff]
        %v379 = vld [vmem:[%s296 + $0x50] sm:$0xff]
        %v380 = vld [vmem:[%s296 + $0x58] sm:$0xff]
        %v381 = vld [vmem:[%s296 + $0x60] sm:$0xff]
        %v382 = vld [vmem:[%s296 + $0x68] sm:$0xff]
        %v383 = vld [vmem:[%s296 + $0x70] sm:$0xff]
        %v384 = vld [vmem:[%s296 + $0x78] sm:$0xff]
        %v385 = vld [vmem:[%s305] sm:$0x3]
        %v387 = vlaneseq
        %v388 = vshrl.u32 %v387, 7
        %v389 = vsub.s32 0, %v388
        %v390 = vrot.slane %v385, %v389
        %v391 = vlaneseq
        %v392 = vshrl.u32 %v391, 7
        %v393 = vsub.s32 1, %v392
        %v394 = vrot.slane %v385, %v393
        %v399 = vunpack.c.l.b16 %v367
        %v400 = vunpack.c.l.b16 %v368
        %v401 = vpack.c.b16 %v400, %v399
        %v419 = vunpack.c.l.b16 %v369
        %v420 = vunpack.c.h.b16 %v369
        %v421 = vunpack.c.l.b16 %v370
        %v422 = vunpack.c.h.b16 %v370
        %v423 = vunpack.c.l.b16 %v371
        %v424 = vunpack.c.h.b16 %v371
        %v425 = vunpack.c.l.b16 %v372
        %v426 = vunpack.c.h.b16 %v372
        %v427 = vunpack.c.l.b16 %v373
        %v428 = vunpack.c.h.b16 %v373
        %v429 = vunpack.c.l.b16 %v374
        %v430 = vunpack.c.h.b16 %v374
        %v431 = vunpack.c.l.b16 %v375
        %v432 = vunpack.c.h.b16 %v375
        %v433 = vunpack.c.l.b16 %v376
        %v434 = vunpack.c.h.b16 %v376
        %v435 = vunpack.c.l.b16 %v377
        %v436 = vunpack.c.h.b16 %v377
        %v437 = vunpack.c.l.b16 %v378
        %v438 = vunpack.c.h.b16 %v378
        %v439 = vunpack.c.l.b16 %v379
        %v440 = vunpack.c.h.b16 %v379
        %v441 = vunpack.c.l.b16 %v380
        %v442 = vunpack.c.h.b16 %v380
        %v443 = vunpack.c.l.b16 %v381
        %v444 = vunpack.c.h.b16 %v381
        %v445 = vunpack.c.l.b16 %v382
        %v446 = vunpack.c.h.b16 %v382
        %v447 = vunpack.c.l.b16 %v383
        %v448 = vunpack.c.h.b16 %v383
        %v449 = vunpack.c.l.b16 %v384
        %v450 = vunpack.c.h.b16 %v384
        %v451 = vpack.c.b16 %v421, %v419
        %v452 = vpack.c.b16 %v422, %v420
        %v453 = vpack.c.b16 %v425, %v423
        %v454 = vpack.c.b16 %v426, %v424
        %v455 = vpack.c.b16 %v429, %v427
        %v456 = vpack.c.b16 %v430, %v428
        %v457 = vpack.c.b16 %v433, %v431
        %v458 = vpack.c.b16 %v434, %v432
        %v459 = vpack.c.b16 %v437, %v435
        %v460 = vpack.c.b16 %v438, %v436
        %v461 = vpack.c.b16 %v441, %v439
        %v462 = vpack.c.b16 %v442, %v440
        %v463 = vpack.c.b16 %v445, %v443
        %v464 = vpack.c.b16 %v446, %v444
        %v465 = vpack.c.b16 %v449, %v447
        %v466 = vpack.c.b16 %v450, %v448
        %483 = vmatprep.subr.bf16.mxu0 %v466
        %484 = vmatpush1.bf16.msra.mxu0 %v465
        %485 = vmatprep.subr.bf16.mxu0 %v464
        %486 = vmatpush1.bf16.msra.mxu0 %v463
        %487 = vmatprep.subr.bf16.mxu0 %v462
        %488 = vmatpush1.bf16.msra.mxu0 %v461
        %489 = vmatprep.subr.bf16.mxu0 %v460
        %490 = vmatpush1.bf16.msra.mxu0 %v459
        %491 = vmatprep.subr.bf16.mxu0 %v458
        %492 = vmatpush1.bf16.msra.mxu0 %v457
        %493 = vmatprep.subr.bf16.mxu0 %v456
        %494 = vmatpush1.bf16.msra.mxu0 %v455
        %495 = vmatprep.subr.bf16.mxu0 %v454
        %496 = vmatpush1.bf16.msra.mxu0 %v453
        %497 = vmatprep.subr.bf16.mxu0 %v452
        %498 = vmatpush1.bf16.msra.mxu0 %v451
        %499 = vmatprep.subr.bf16.mxu0 0
        %500 = vmatpush2.bf16.msra.mxu0 0
        %501 = vmatprep.subr.bf16.mxu0 0
        %502 = vmatpush2.bf16.msra.mxu0 0
        %503 = vmatprep.subr.bf16.mxu0 0
        %504 = vmatpush2.bf16.msra.mxu0 0
        %505 = vmatprep.subr.bf16.mxu0 0
        %506 = vmatpush2.bf16.msra.mxu0 0
        %507 = vmatprep.subr.bf16.mxu0 0
        %508 = vmatpush2.bf16.msra.mxu0 0
        %509 = vmatprep.subr.bf16.mxu0 0
        %510 = vmatpush2.bf16.msra.mxu0 0
        %511 = vmatprep.subr.bf16.mxu0 0
        %512 = vmatpush2.bf16.msra.mxu0 0
        %513 = vmatprep.subr.bf16.mxu0 0
        %514 = vmatpush2.bf16.msra.mxu0 0
        %515 = vmatprep.mubr.bf16.mxu0 0
        %516 = vmatmul.mubr.bf16.gmra.mxu0 %v401
        %v517 = vpop.f32.mrf.mxu0
        %v518 = vadd.f32 %v390, %v517
        %v519 = vpop.f32.mrf.mxu0
        %v520 = vadd.f32 %v394, %v519
        %v521 = vpop.f32.mrf.mxu0
        %v522 = vadd.f32 %v390, %v521
        %v523 = vpop.f32.mrf.mxu0
        %v524 = vadd.f32 %v394, %v523
        %525 = vdwg.mxu0
        %v526 = vxor.u32 %v518, 2147483648
        %v527 = vxor.u32 %v522, 2147483648
        %v528 = vmul.f32 %v526, 1.442695
        %v529 = vpow.pop %v528
        %v530 = vmul.f32 %v527, 1.442695
        %v531 = vpow.pop %v530
        %v532 = vadd.f32 %v529, 1.0
        %v533 = vadd.f32 %v531, 1.0
        %v534 = vrcp.pop %v532
        %v535 = vmul.f32 1.0, %v534
        %v536 = vrcp.pop %v533
        %v537 = vmul.f32 1.0, %v536
        %v538 = vmul.f32 %v518, %v535
        %v539 = vmul.f32 %v522, %v537
        %v540 = vmul.f32 %v538, %v520
        %v541 = vmul.f32 %v539, %v524
        %v542 = vpack.c.bf16 %v541, %v540
        %v543 = vld [vmem:[%s314] sm:$0xf]
        %v544 = vld [vmem:[%s314 + $0x4] sm:$0xf]
        %v545 = vld [vmem:[%s314 + $0x8] sm:$0xf]
        %v546 = vld [vmem:[%s314 + $0xc] sm:$0xf]
        %v547 = vld [vmem:[%s314 + $0x10] sm:$0xf]
        %v548 = vld [vmem:[%s314 + $0x14] sm:$0xf]
        %v549 = vld [vmem:[%s314 + $0x18] sm:$0xf]
        %v550 = vld [vmem:[%s314 + $0x1c] sm:$0xf]
        %v551 = vld [vmem:[%s314 + $0x20] sm:$0xf]
        %v552 = vld [vmem:[%s314 + $0x24] sm:$0xf]
        %v553 = vld [vmem:[%s314 + $0x28] sm:$0xf]
        %v554 = vld [vmem:[%s314 + $0x2c] sm:$0xf]
        %v555 = vld [vmem:[%s314 + $0x30] sm:$0xf]
        %v556 = vld [vmem:[%s314 + $0x34] sm:$0xf]
        %v557 = vld [vmem:[%s314 + $0x38] sm:$0xf]
        %v558 = vld [vmem:[%s314 + $0x3c] sm:$0xf]
        %v575 = vunpack.c.l.b16 %v543
        %v576 = vunpack.c.l.b16 %v544
        %v577 = vunpack.c.l.b16 %v545
        %v578 = vunpack.c.l.b16 %v546
        %v579 = vunpack.c.l.b16 %v547
        %v580 = vunpack.c.l.b16 %v548
        %v581 = vunpack.c.l.b16 %v549
        %v582 = vunpack.c.l.b16 %v550
        %v583 = vunpack.c.l.b16 %v551
        %v584 = vunpack.c.l.b16 %v552
        %v585 = vunpack.c.l.b16 %v553
        %v586 = vunpack.c.l.b16 %v554
        %v587 = vunpack.c.l.b16 %v555
        %v588 = vunpack.c.l.b16 %v556
        %v589 = vunpack.c.l.b16 %v557
        %v590 = vunpack.c.l.b16 %v558
        %v591 = vpack.c.b16 %v576, %v575
        %v592 = vpack.c.b16 %v578, %v577
        %v593 = vpack.c.b16 %v580, %v579
        %v594 = vpack.c.b16 %v582, %v581
        %v595 = vpack.c.b16 %v584, %v583
        %v596 = vpack.c.b16 %v586, %v585
        %v597 = vpack.c.b16 %v588, %v587
        %v598 = vpack.c.b16 %v590, %v589
        %607 = vmatprep.subr.bf16.mxu0 0
        %608 = vmatpush1.bf16.msra.mxu0 %v598
        %609 = vmatprep.subr.bf16.mxu0 0
        %610 = vmatpush1.bf16.msra.mxu0 %v597
        %611 = vmatprep.subr.bf16.mxu0 0
        %612 = vmatpush1.bf16.msra.mxu0 %v596
        %613 = vmatprep.subr.bf16.mxu0 0
        %614 = vmatpush1.bf16.msra.mxu0 %v595
        %615 = vmatprep.subr.bf16.mxu0 0
        %616 = vmatpush1.bf16.msra.mxu0 %v594
        %617 = vmatprep.subr.bf16.mxu0 0
        %618 = vmatpush1.bf16.msra.mxu0 %v593
        %619 = vmatprep.subr.bf16.mxu0 0
        %620 = vmatpush1.bf16.msra.mxu0 %v592
        %621 = vmatprep.subr.bf16.mxu0 0
        %622 = vmatpush1.bf16.msra.mxu0 %v591
        %623 = vmatprep.subr.bf16.mxu0 0
        %624 = vmatpush2.bf16.msra.mxu0 0
        %625 = vmatprep.subr.bf16.mxu0 0
        %626 = vmatpush2.bf16.msra.mxu0 0
        %627 = vmatprep.subr.bf16.mxu0 0
        %628 = vmatpush2.bf16.msra.mxu0 0
        %629 = vmatprep.subr.bf16.mxu0 0
        %630 = vmatpush2.bf16.msra.mxu0 0
        %631 = vmatprep.subr.bf16.mxu0 0
        %632 = vmatpush2.bf16.msra.mxu0 0
        %633 = vmatprep.subr.bf16.mxu0 0
        %634 = vmatpush2.bf16.msra.mxu0 0
        %635 = vmatprep.subr.bf16.mxu0 0
        %636 = vmatpush2.bf16.msra.mxu0 0
        %637 = vmatprep.subr.bf16.mxu0 0
        %638 = vmatpush2.bf16.msra.mxu0 0
        %639 = vmatprep.mubr.bf16.mxu0 0
        %640 = vmatmul.mubr.bf16.gmra.mxu0 %v542
        %v641 = vpop.f32.mrf.mxu0
        %v642 = vadd.f32 0.0, %v641
        %v643 = vpop.f32.mrf.mxu0
        %v644 = vpop.f32.mrf.mxu0
        %v645 = vadd.f32 0.0, %v644
        %v646 = vpop.f32.mrf.mxu0
        %647 = vdwg.mxu0
        %v648 = vadd.f32 %v365, %v642
        %v649 = vadd.f32 %v366, %v645
        %650 = vst [vmem:[#allocation10] sm:$0xff] %v648
        %651 = vst [vmem:[#allocation10 + $0x8] sm:$0xff] %v649
        // Predicated region
        $region61: #{tpu_custom_call.1} parent=39 // pred_check
          %p652 = pneg %p179
        $region62: #{tpu_custom_call.1} parent=39 // pred_check_branch
          %654 = sbr.rel (%p652) target = $region64
        $region63: #{tpu_custom_call.1} parent=39 // pred_region
          %s655 = smul.u32 2, %s28
          %s657 = ssub.s32 256, 256
          %658 = vsyncadd [#allocation4], %s657
          %s659 = smul.addr %s655, 128
          %s660 = scalar_lea.hbm %s5, %s659
          %s661 = sshll.u32 [#allocation10], 4
          %s662 = int_to_ptr.vmem [resolvable:$true] %s661
          %667 = dma.vmem_to_hbm [thread:$0]  %s662, 256, %s660, [#allocation4], 128, 128, 8
        $region64: #{tpu_custom_call.1} parent=39 // pred_fallthru
          _
        // Predicated region
        $region65: #{tpu_custom_call.1} parent=39 // pred_check
          %p668 = pneg %p179
        $region66: #{tpu_custom_call.1} parent=39 // pred_check_branch
          %670 = sbr.rel (%p668) target = $region68
        $region67: #{tpu_custom_call.1} parent=39 // pred_region
          %671 = dma.done [#allocation4], 256
        $region68: #{tpu_custom_call.1} parent=39 // pred_fallthru
          _
      $region40: #{tpu_custom_call.1} parent=5 // pred_fallthru
        _
      %p672 = scmp.le.s32.totalorder 2, %s19
      // Predicated region
      $region69: #{tpu_custom_call.1} parent=5 // pred_check
        %p673 = pneg %p672
      $region70: #{tpu_custom_call.1} parent=5 // pred_check_branch
        %675 = sbr.rel (%p673) target = $region72
      $region71: #{tpu_custom_call.1} parent=5 // pred_region
        %s676 = ssub.s32 %s19, 2
      $region72: #{tpu_custom_call.1} parent=5 // pred_fallthru
        _
    $region6: #{tpu_custom_call.1} parent=1 // loop_footer
      %s23 = sadd.s32 1, %s19
    $region7: #{tpu_custom_call.1} parent=1 // loop_footer_branch
      %18 = sbr.rel target = $region3
    $region8: #{tpu_custom_call.1} parent=1 // loop_exit
      _
    %677 = vsyncpa [#allocation3], 1
    %s678 = scalar_lea.sflag [#allocation3], 1
    %679 = vsyncpa %s678, 1
    %680 = vsyncpa [#allocation6], 1
    %s681 = scalar_lea.sflag [#allocation6], 1
    %682 = vsyncpa %s681, 1
    %683 = vsyncpa [#allocation9], 1
    %s684 = scalar_lea.sflag [#allocation9], 1
    %685 = vsyncpa %s684, 1
    %686 = vsyncpa [#allocation4], 1
    %s687 = scalar_lea.sflag [#allocation4], 1
    %688 = vsyncpa %s687, 1

</llo_original>
